<compile_context>
chip_gen: v7x
topology: tpu7x:2x2x1
jax: 0.10.0
libtpu: 0.0.40
codegen_flags: <defaults>
</compile_context>

<pallas_src>
import jax
import jax.numpy as jnp
from jax.experimental import pallas as pl
from jax.experimental.pallas import tpu as pltpu


def linear_kernel(x_ref, w_ref, b_ref, o_ref):
    x = x_ref[...]                       # (TB, IN) f32 batch tile
    w = w_ref[...]                       # (1, IN)  f32, resident across the grid
    b = b_ref[0]                         # scalar bias from SMEM
    # VPU multiply + lane reduce; (TB, 1) column written straight to the output tile.
    y = jnp.sum(x * w, axis=-1, keepdims=True) + b
    o_ref[...] = y.astype(o_ref.dtype)


def dummy_model_forward(x, weight, bias, *, tb=512):
    """x: (B, 10) f32, weight: (1, 10) f32, bias: (1,) f32 -> (B, 1) f32."""
    B, in_f = x.shape
    out_f = weight.shape[0]
    assert out_f == 1, "DummyModel fc has a single output feature"

    # Batch tile: full batch if small, else 512-row tiles (multiple of 8 sublanes,
    # ~20 KiB per input buffer -> trivially fits scoped VMEM on v5e/v6e/v7x).
    TB = B if B < tb else tb
    Bp = pl.cdiv(B, TB) * TB
    if Bp != B:
        x = jnp.pad(x, ((0, Bp - B), (0, 0)))
    grid = (Bp // TB,)

    out = pl.pallas_call(
        linear_kernel,
        out_shape=jax.ShapeDtypeStruct((Bp, out_f), jnp.float32),
        grid=grid,
        in_specs=[
            pl.BlockSpec((TB, in_f), lambda i: (i, 0)),              # x tile
            pl.BlockSpec((out_f, in_f), lambda i: (0, 0)),           # weight (resident)
            pl.BlockSpec(memory_space=pltpu.MemorySpace.SMEM),       # bias scalar
        ],
        out_specs=pl.BlockSpec((TB, out_f), lambda i: (i, 0)),       # (TB, 1) column
        compiler_params=pltpu.CompilerParams(
            dimension_semantics=("parallel",)),
    )(x, weight, bias)

    return out[:B]


if __name__ == "__main__":
    key = jax.random.PRNGKey(0)
    kx, kw, kb, kx2 = jax.random.split(key, 4)

    B, IN, OUT = 8, 10, 1

    # Deterministic parameter init (mimics nn.Linear's uniform(-1/sqrt(in), 1/sqrt(in)))
    bound = 1.0 / jnp.sqrt(jnp.float32(IN))
    weight = jax.random.uniform(kw, (OUT, IN), minval=-bound, maxval=bound,
                                dtype=jnp.float32)
    bias = jax.random.uniform(kb, (OUT,), minval=-bound, maxval=bound,
                              dtype=jnp.float32)

    # Small-batch check (single tile, block == full array).
    x = jax.random.normal(kx, (B, IN), dtype=jnp.float32)
    out = dummy_model_forward(x, weight, bias)
    jax.block_until_ready(out)
    ref = x @ weight.T + bias
    assert out.shape == (B, OUT)
    assert jnp.allclose(out, ref, atol=1e-5), "mismatch vs reference (small batch)"

    # Larger-batch check exercising the batch grid + padding path.
    B2 = 700
    x2 = jax.random.normal(kx2, (B2, IN), dtype=jnp.float32)
    out2 = dummy_model_forward(x2, weight, bias)
    jax.block_until_ready(out2)
    ref2 = x2 @ weight.T + bias
    assert out2.shape == (B2, OUT)
    assert jnp.allclose(out2, ref2, atol=1e-5), "mismatch vs reference (tiled batch)"

    print("KERNEL_OK")
</pallas_src>

<mosaic_0001>
module attributes {stable_mosaic.version = 11 : i64} {
  func.func @linear_kernel(%arg0: i32, %arg1: memref<8x10xf32, #tpu.memory_space<vmem>>, %arg2: memref<1x10xf32, #tpu.memory_space<vmem>>, %arg3: memref<1xf32, #tpu.memory_space<smem>>, %arg4: memref<8x1xf32, #tpu.memory_space<vmem>>) attributes {dimension_semantics = [#tpu.dimension_semantics<parallel>], iteration_bounds = array<i64: 1>, scalar_prefetch = 0 : i64, scratch_operands = 0 : i64, tpu.core_type = #tpu.core_type<tc>, window_params = [{transform_indices = @transform_0, window_bounds = array<i64: 8, 10>}, {pipeline_mode = #tpu.pipeline_mode<synchronous>, transform_indices = @transform_1, window_bounds = array<i64: 1, 10>}, {transform_indices = @transform_2, window_bounds = array<i64: 1>}, {transform_indices = @transform_3, window_bounds = array<i64: 8, 1>}]} {
    %c0 = arith.constant 0 : index
    %c0_0 = arith.constant 0 : index
    %0 = vector.load %arg1[%c0, %c0_0] : memref<8x10xf32, #tpu.memory_space<vmem>>, vector<8x10xf32>
    %c0_1 = arith.constant 0 : index
    %c0_2 = arith.constant 0 : index
    %1 = vector.load %arg2[%c0_1, %c0_2] : memref<1x10xf32, #tpu.memory_space<vmem>>, vector<1x10xf32>
    %c0_3 = arith.constant 0 : index
    %2 = memref.load %arg3[%c0_3] : memref<1xf32, #tpu.memory_space<smem>>
    %3 = vector.broadcast %1 : vector<1x10xf32> to vector<8x10xf32>
    %4 = arith.mulf %0, %3 : vector<8x10xf32>
    %cst = arith.constant dense<0.000000e+00> : vector<8xf32>
    %5 = vector.multi_reduction <add>, %4, %cst [1] : vector<8x10xf32> to vector<8xf32>
    %6 = vector.shape_cast %5 : vector<8xf32> to vector<8x1xf32>
    %7 = vector.broadcast %2 : f32 to vector<8x1xf32>
    %8 = arith.addf %6, %7 : vector<8x1xf32>
    %c0_4 = arith.constant 0 : index
    %c0_5 = arith.constant 0 : index
    %9 = vector.load %arg4[%c0_4, %c0_5] : memref<8x1xf32, #tpu.memory_space<vmem>>, vector<8x1xf32>
    tpu.vector_store %arg4[%c0_4, %c0_5], %8 {strides = array<i32>} : memref<8x1xf32, #tpu.memory_space<vmem>>, vector<8x1xf32>,
    return
  }
  func.func @transform_0(%arg0: i32) -> (i32, i32) {
    %c0_i32 = arith.constant 0 : i32
    %c0_i32_0 = arith.constant 0 : i32
    return %arg0, %c0_i32 : i32, i32
  }
  func.func @transform_1(%arg0: i32) -> (i32, i32) {
    %c0_i32 = arith.constant 0 : i32
    %c0_i32_0 = arith.constant 0 : i32
    %c0_i32_1 = arith.constant 0 : i32
    return %c0_i32, %c0_i32_0 : i32, i32
  }
  func.func @transform_2(%arg0: i32) -> i32 {
    %c0_i32 = arith.constant 0 : i32
    %c0_i32_0 = arith.constant 0 : i32
    return %c0_i32 : i32
  }
  func.func @transform_3(%arg0: i32) -> (i32, i32) {
    %c0_i32 = arith.constant 0 : i32
    %c0_i32_0 = arith.constant 0 : i32
    return %arg0, %c0_i32 : i32, i32
  }
}

</mosaic_0001>

<llo_original>
// kernel: tpu_custom_call.1
$region0: #{tpu_custom_call.1}
  #allocation0 [shape = 'u32[]', space=smem, size = 0x4, offset = 0x4, fixed_abs, tag = 'smem constant byte address 0x4 - core index']
  #allocation1 [shape = 'u32[144,128]{1,0:T(1,128)}', space=vmem, size = 0x12000, scoped, tag = 'internal scratch']
  #allocation2 [shape = 'f32[1]{0:T(128)S(6)}', space=smem, size = 0x200, scoped, tag = 'scoped memory for tpu_custom_call.1']
  %s0 = inlined_call_operand.hbm [shape: f32[8,10], index: 0, kind: input, shape index: {}]
  %s1 = inlined_call_operand.vmem [shape: f32[1,10], index: 1, kind: input, shape index: {}]
  %s2 = inlined_call_operand.<no memory space> [shape: f32[1], index: 2, kind: input, shape index: {}]
  %s3 = inlined_call_operand.vmem [shape: f32[8,1], index: 3, kind: output, shape index: {}]
  %s4 = sld [smem:[#allocation0]]
  $region26: #{tpu_custom_call.1} parent=0
    _
  %s6 = ssub.s32 1, %s4
  %s7 = scalar_select 0, %s6, %s4
  %8 = sst [smem:[#allocation2]] %s2
  $region1: #{tpu_custom_call.1} parent=0
    #allocation3 [shape = 'u8[4096]{0}', space=vmem, size = 0x1000, scoped, tag = 'input window, operand 0, single buffered']
    #allocation4 [shape = 's32[1]{0}', space=sflag, size = 0x4, scoped, tag = 'scoped memory for tpu_custom_call.1']
    %9 = vsyncpa [#allocation4], 0
    // Predicated region
    $region2: #{tpu_custom_call.1} parent=1 // pred_check
      _
    $region3: #{tpu_custom_call.1} parent=1 // pred_check_branch
      %11 = sbr.rel (0) target = $region5
    $region4: #{tpu_custom_call.1} parent=1 // pred_region
      %s13 = ssub.s32 128, 128
      %14 = vsyncadd [#allocation4], %s13
      %s16 = sshll.u32 [#allocation3], 4
      %s17 = int_to_ptr.vmem [resolvable:$true] %s16
      %19 = dma.hbm_to_vmem [thread:$0]  %s0, 128, %s17, [#allocation4]
    $region5: #{tpu_custom_call.1} parent=1 // pred_fallthru
      _
    // Predicated region
    $region6: #{tpu_custom_call.1} parent=1 // pred_check
      _
    $region7: #{tpu_custom_call.1} parent=1 // pred_check_branch
      %21 = sbr.rel (0) target = $region9
    $region8: #{tpu_custom_call.1} parent=1 // pred_region
      _
    $region9: #{tpu_custom_call.1} parent=1 // pred_fallthru
      _
    // Predicated region
    $region10: #{tpu_custom_call.1} parent=1 // pred_check
      _
    $region11: #{tpu_custom_call.1} parent=1 // pred_check_branch
      %23 = sbr.rel (0) target = $region13
    $region12: #{tpu_custom_call.1} parent=1 // pred_region
      _
    $region13: #{tpu_custom_call.1} parent=1 // pred_fallthru
      _
    // Predicated region
    $region14: #{tpu_custom_call.1} parent=1 // pred_check
      _
    $region15: #{tpu_custom_call.1} parent=1 // pred_check_branch
      %25 = sbr.rel (0) target = $region17
    $region16: #{tpu_custom_call.1} parent=1 // pred_region
      %26 = dma.done [#allocation4], 128
    $region17: #{tpu_custom_call.1} parent=1 // pred_fallthru
      _
    %v27 = vld [vmem:[#allocation3] sm:$0xff]
    %v28 = vld [vmem:[%s1] sm:$0x1]
    %s29 = sld [smem:[#allocation2]]
    %v31 = vlaneseq
    %v32 = vshrl.u32 %v31, 7
    %v33 = vsub.s32 0, %v32
    %v34 = vrot.slane %v28, %v33
    %v36 = vmul.f32 %v27, %v34
    %vm37 = vcmask 80896
    %v38 = vsel %vm37, %v36, 0.0
    %39 = vadd.xlane.f32.xlu0 %v38
    %v40 = vpop.xlane.xlu0 %39
    %v41 = vstv %s29
    %v42 = vadd.f32 %v40, %v41
    %vm43 = vcmask 7168
    %44 = vst.msk [vmem:[%s3] sm:$0xff] %vm43, %v42
    // Predicated region
    $region18: #{tpu_custom_call.1} parent=1 // pred_check
      _
    $region19: #{tpu_custom_call.1} parent=1 // pred_check_branch
      %46 = sbr.rel (0) target = $region21
    $region20: #{tpu_custom_call.1} parent=1 // pred_region
      _
    $region21: #{tpu_custom_call.1} parent=1 // pred_fallthru
      _
    // Predicated region
    $region22: #{tpu_custom_call.1} parent=1 // pred_check
      _
    $region23: #{tpu_custom_call.1} parent=1 // pred_check_branch
      %48 = sbr.rel (0) target = $region25
    $region24: #{tpu_custom_call.1} parent=1 // pred_region
      _
    $region25: #{tpu_custom_call.1} parent=1 // pred_fallthru
      _
    %49 = vsyncpa [#allocation4], 1

</llo_original>
